<compile_context>
chip_gen: v7x
topology: tpu7x:2x2x1
jax: 0.10.0
libtpu: 0.0.40
codegen_flags: <defaults>
</compile_context>

<pallas_src>
import math

import jax
import jax.numpy as jnp
from jax.experimental import pallas as pl
from jax.experimental.pallas import tpu as pltpu


# --------------------------------------------------------------------------- #
# Kernel A: row-tiled normalized-adjacency aggregation   AX = A_norm @ X
# --------------------------------------------------------------------------- #
def _agg_kernel(a_ref, x_ref, o_ref):
    o_ref[...] = jnp.dot(a_ref[...], x_ref[...],
                         preferred_element_type=jnp.float32)


def adj_aggregate(A_norm, X, row_tile=256):
    N, F = X.shape
    tm = N if N <= row_tile else row_tile        # grid=(1,) at small N
    cost = pl.CostEstimate(flops=2 * N * N * F,
                           transcendentals=0,
                           bytes_accessed=4 * (N * N + 2 * N * F))
    return pl.pallas_call(
        _agg_kernel,
        out_shape=jax.ShapeDtypeStruct((N, F), jnp.float32),
        grid=(pl.cdiv(N, tm),),
        in_specs=[pl.BlockSpec((tm, N), lambda i: (i, 0)),
                  pl.BlockSpec((N, F), lambda i: (0, 0))],
        out_specs=pl.BlockSpec((tm, F), lambda i: (i, 0)),
        compiler_params=pltpu.CompilerParams(dimension_semantics=("parallel",)),
        cost_estimate=cost,
    )(A_norm, X)


# --------------------------------------------------------------------------- #
# Kernel B: fused GRU weight evolution + GCN projection   out = AX @ GRU(x_t,h)
#
#   xh_ref   : (F, 2F+8)  = [X_tilde | h | 1 | 0]   (ones column hits the bias row)
#   wcomb_ref: (2F+8, 4F) = [W_ir^T|W_iz^T|W_in^T|0 ; W_hr^T|W_hz^T|0|W_hn^T ;
#                            b_ir+b_hr|b_iz+b_hz|b_in|b_hn ; 0]
#   ax_ref   : (N, F)     = A_norm @ X
# --------------------------------------------------------------------------- #
def _gru_proj_kernel(xh_ref, wcomb_ref, ax_ref, o_ref):
    F = o_ref.shape[1]
    xh = xh_ref[...]                                      # (F, 2F+8)
    h = xh[:, F:2 * F]                                    # (F, F) current weight

    # Single lane-dense gate matmul (4F = 128 lanes for F=32), biases folded in.
    g = jnp.dot(xh, wcomb_ref[...], preferred_element_type=jnp.float32)  # (F, 4F)
    r = jax.nn.sigmoid(g[:, 0:F])                          # r = σ(Wir x + Whr h + b)
    z = jax.nn.sigmoid(g[:, F:2 * F])                      # z = σ(Wiz x + Whz h + b)
    n = jnp.tanh(g[:, 2 * F:3 * F] + r * g[:, 3 * F:4 * F])  # n = tanh(gi_n + r*gh_n)
    w_new = (1.0 - z) * n + z * h                          # (F, F) evolved weight

    # GCN projection with pre-aggregated activations: out = (A_norm @ X) @ W_new.
    o_ref[...] = jnp.dot(ax_ref[...], w_new,
                         preferred_element_type=jnp.float32).astype(o_ref.dtype)


def gru_evolve_and_project(XH_aug, W_comb, AX):
    N, F = AX.shape
    K = XH_aug.shape[1]
    cost = pl.CostEstimate(flops=2 * F * K * 4 * F + 2 * N * F * F,
                           transcendentals=3 * F * F,
                           bytes_accessed=4 * (F * K + K * 4 * F + 2 * N * F))
    return pl.pallas_call(
        _gru_proj_kernel,
        out_shape=jax.ShapeDtypeStruct((N, F), jnp.float32),
        grid=(1,),
        in_specs=[pl.BlockSpec((F, K), lambda i: (0, 0)),
                  pl.BlockSpec((K, 4 * F), lambda i: (0, 0)),
                  pl.BlockSpec((N, F), lambda i: (0, 0))],
        out_specs=pl.BlockSpec((N, F), lambda i: (0, 0)),
        compiler_params=pltpu.CompilerParams(dimension_semantics=("arbitrary",)),
        cost_estimate=cost,
    )(XH_aug, W_comb, AX)


# --------------------------------------------------------------------------- #
# Full forward pass (top_k / gather / dense scatter stay in plain XLA glue)
# --------------------------------------------------------------------------- #
def evolve_gcnh_forward(X, src, dst, edge_weight, params, improved=False):
    N, F = X.shape
    # The reference module implicitly assumes ratio*N == F (k == in_channels).
    assert N >= F, "TopKPooling with ratio=F/N requires N >= F"

    # --- 1. TopK pooling --------------------------------------------------- #
    # TODO(synk): top_k / row-gather have no clean Pallas equivalent; kept in XLA.
    p = params["pool_p"]
    p_norm = jnp.maximum(jnp.linalg.norm(p), 1e-12)
    scores = X @ (p / p_norm)                                       # (N,)
    top_vals, perm = jax.lax.top_k(scores, F)
    X_tilde = X[perm] * jnp.tanh(top_vals)[:, None]                 # (F, F)

    # --- 3a. Dense, pre-normalized adjacency (scatter + D^-1/2 in XLA) ----- #
    fill = 2.0 if improved else 1.0
    w = jnp.ones((src.shape[0],), jnp.float32) if edge_weight is None else edge_weight
    A_hat = jnp.zeros((N, N), jnp.float32).at[dst, src].add(w)      # A[i,j]: edge j->i
    A_hat = A_hat + fill * jnp.eye(N, dtype=jnp.float32)            # self loops
    deg = A_hat.sum(axis=1)
    dinv = jnp.where(deg > 0.0, jax.lax.rsqrt(deg), 0.0)
    A_norm = dinv[:, None] * A_hat * dinv[None, :]                  # D^-1/2 A_hat D^-1/2

    # --- 3b. Aggregation kernel (independent of the GRU, row-parallel) ----- #
    AX = adj_aggregate(A_norm, X)                                   # (N, F)

    # --- 2. Pack the GRU input: [X_tilde | h | 1 | 0] (bias row folded) ----- #
    pad_cols = params["W_comb"].shape[0] - 2 * F - 1
    XH_aug = jnp.concatenate(
        [X_tilde, params["W_init"],
         jnp.ones((F, 1), jnp.float32), jnp.zeros((F, pad_cols), jnp.float32)],
        axis=1)                                                     # (F, 2F+8)

    # --- 2 + 3c. Fused GRU step + projection kernel ------------------------ #
    return gru_evolve_and_project(XH_aug, params["W_comb"], AX)     # (N, F)


# --------------------------------- main ------------------------------------- #
if __name__ == "__main__":
    N, F, E = 64, 32, 256           # num_of_nodes, in_channels, num_edges

    key = jax.random.PRNGKey(0)
    keys = jax.random.split(key, 9)

    X = jax.random.normal(keys[0], (N, F), dtype=jnp.float32)
    src = jax.random.randint(keys[1], (E,), 0, N)
    dst = jax.random.randint(keys[2], (E,), 0, N)
    edge_weight = jnp.ones((E,), jnp.float32)

    # ---- deterministic parameter init (mirrors the module's __init__) ----
    a_gl = math.sqrt(6.0 / (F + F))
    W_init = jax.random.uniform(keys[3], (F, F), jnp.float32, -a_gl, a_gl)   # glorot
    bnd = 1.0 / math.sqrt(F)
    pool_p = jax.random.uniform(keys[4], (F,), jnp.float32, -bnd, bnd)       # TopK attn
    # GRU params, gate order (r, z, n): weight_ih (3F,F), weight_hh (3F,F), biases (3F,)
    Wih = jax.random.uniform(keys[5], (3 * F, F), jnp.float32, -bnd, bnd)
    Whh = jax.random.uniform(keys[6], (3 * F, F), jnp.float32, -bnd, bnd)
    bih = jax.random.uniform(keys[7], (3 * F,), jnp.float32, -bnd, bnd)
    bhh = jax.random.uniform(keys[8], (3 * F,), jnp.float32, -bnd, bnd)

    # ---- pack all six GRU weight blocks + four bias blocks into one matrix ----
    #   rows [0:F)  : W_ir^T | W_iz^T | W_in^T |   0
    #   rows [F:2F) : W_hr^T | W_hz^T |   0    | W_hn^T
    #   row   2F    : b_ir+b_hr | b_iz+b_hz | b_in | b_hn   (hit by the ones column)
    #   rows 2F+1.. : zero padding (sublane alignment to 2F+8)
    K_AUG = 2 * F + 8
    W_comb = jnp.zeros((K_AUG, 4 * F), jnp.float32)
    W_comb = W_comb.at[0:F, 0:F].set(Wih[0:F].T)
    W_comb = W_comb.at[0:F, F:2 * F].set(Wih[F:2 * F].T)
    W_comb = W_comb.at[0:F, 2 * F:3 * F].set(Wih[2 * F:3 * F].T)
    W_comb = W_comb.at[F:2 * F, 0:F].set(Whh[0:F].T)
    W_comb = W_comb.at[F:2 * F, F:2 * F].set(Whh[F:2 * F].T)
    W_comb = W_comb.at[F:2 * F, 3 * F:4 * F].set(Whh[2 * F:3 * F].T)
    bias_row = jnp.concatenate([bih[0:F] + bhh[0:F], bih[F:2 * F] + bhh[F:2 * F],
                                bih[2 * F:3 * F], bhh[2 * F:3 * F]])
    W_comb = W_comb.at[2 * F, :].set(bias_row)

    params = {"pool_p": pool_p, "W_init": W_init, "W_comb": W_comb}

    out = evolve_gcnh_forward(X, src, dst, edge_weight, params, improved=False)
    out = jax.block_until_ready(out)

    assert out.shape == (N, F) and out.dtype == jnp.float32
    assert bool(jnp.all(jnp.isfinite(out)))
    print("KERNEL_OK")
</pallas_src>

<mosaic_0001>
module attributes {stable_mosaic.version = 11 : i64} {
  func.func @_agg_kernel(%arg0: i32, %arg1: memref<64x64xf32, #tpu.memory_space<vmem>>, %arg2: memref<64x32xf32, #tpu.memory_space<vmem>>, %arg3: memref<64x32xf32, #tpu.memory_space<vmem>>) attributes {dimension_semantics = [#tpu.dimension_semantics<parallel>], iteration_bounds = array<i64: 1>, scalar_prefetch = 0 : i64, scratch_operands = 0 : i64, tpu.core_type = #tpu.core_type<tc>, window_params = [{transform_indices = @transform_0, window_bounds = array<i64: 64, 64>}, {pipeline_mode = #tpu.pipeline_mode<synchronous>, transform_indices = @transform_1, window_bounds = array<i64: 64, 32>}, {transform_indices = @transform_2, window_bounds = array<i64: 64, 32>}]} {
    %c0 = arith.constant 0 : index
    %c0_0 = arith.constant 0 : index
    %0 = vector.load %arg1[%c0, %c0_0] : memref<64x64xf32, #tpu.memory_space<vmem>>, vector<64x64xf32>
    %c0_1 = arith.constant 0 : index
    %c0_2 = arith.constant 0 : index
    %1 = vector.load %arg2[%c0_1, %c0_2] : memref<64x32xf32, #tpu.memory_space<vmem>>, vector<64x32xf32>
    %cst = arith.constant dense<0.000000e+00> : vector<64x32xf32>
    %2 = tpu.matmul %0, %1, %cst {dimension_numbers = #tpu.dot_dimension_numbers<[1], [0], [0], [1], [0, 0, 1, 1], [], []>} : vector<64x64xf32>, vector<64x32xf32>, vector<64x32xf32> -> vector<64x32xf32>
    %c0_3 = arith.constant 0 : index
    %c0_4 = arith.constant 0 : index
    %3 = vector.load %arg3[%c0_3, %c0_4] : memref<64x32xf32, #tpu.memory_space<vmem>>, vector<64x32xf32>
    tpu.vector_store %arg3[%c0_3, %c0_4], %2 {strides = array<i32>} : memref<64x32xf32, #tpu.memory_space<vmem>>, vector<64x32xf32>,
    return
  }
  func.func @transform_0(%arg0: i32) -> (i32, i32) {
    %c0_i32 = arith.constant 0 : i32
    %c0_i32_0 = arith.constant 0 : i32
    return %arg0, %c0_i32 : i32, i32
  }
  func.func @transform_1(%arg0: i32) -> (i32, i32) {
    %c0_i32 = arith.constant 0 : i32
    %c0_i32_0 = arith.constant 0 : i32
    %c0_i32_1 = arith.constant 0 : i32
    return %c0_i32, %c0_i32_0 : i32, i32
  }
  func.func @transform_2(%arg0: i32) -> (i32, i32) {
    %c0_i32 = arith.constant 0 : i32
    %c0_i32_0 = arith.constant 0 : i32
    return %arg0, %c0_i32 : i32, i32
  }
}

</mosaic_0001>

<llo_original>
// kernel: tpu_custom_call.1
$region0: #{tpu_custom_call.1}
  #allocation0 [shape = 'u32[]', space=smem, size = 0x4, offset = 0x4, fixed_abs, tag = 'smem constant byte address 0x4 - core index']
  #allocation1 [shape = 'u32[144,128]{1,0:T(1,128)}', space=vmem, size = 0x12000, scoped, tag = 'internal scratch']
  %s0 = inlined_call_operand.vmem [shape: f32[64,64], index: 0, kind: input, shape index: {}]
  %s1 = inlined_call_operand.vmem [shape: f32[64,32], index: 1, kind: input, shape index: {}]
  %s2 = inlined_call_operand.vmem [shape: f32[64,32], index: 2, kind: output, shape index: {}]
  %s3 = sld [smem:[#allocation0]]
  $region18: #{tpu_custom_call.1} parent=0
    _
  %s5 = ssub.s32 1, %s3
  %s6 = scalar_select 0, %s5, %s3
  // Predicated region
  $region2: #{tpu_custom_call.1} parent=0 // pred_check
    _
  $region3: #{tpu_custom_call.1} parent=0 // pred_check_branch
    %8 = sbr.rel (0) target = $region5
  $region4: #{tpu_custom_call.1} parent=0 // pred_region
    _
  $region5: #{tpu_custom_call.1} parent=0 // pred_fallthru
    _
  // Predicated region
  $region6: #{tpu_custom_call.1} parent=0 // pred_check
    _
  $region7: #{tpu_custom_call.1} parent=0 // pred_check_branch
    %10 = sbr.rel (0) target = $region9
  $region8: #{tpu_custom_call.1} parent=0 // pred_region
    _
  $region9: #{tpu_custom_call.1} parent=0 // pred_fallthru
    _
  %v11 = vld [vmem:[%s0] sm:$0xff]
  %v12 = vld [vmem:[%s0 + $0x8] sm:$0xff]
  %v13 = vld [vmem:[%s0 + $0x10] sm:$0xff]
  %v14 = vld [vmem:[%s0 + $0x18] sm:$0xff]
  %v15 = vld [vmem:[%s0 + $0x20] sm:$0xff]
  %v16 = vld [vmem:[%s0 + $0x28] sm:$0xff]
  %v17 = vld [vmem:[%s0 + $0x30] sm:$0xff]
  %v18 = vld [vmem:[%s0 + $0x38] sm:$0xff]
  %v19 = vld [vmem:[%s1] sm:$0xff]
  %v20 = vld [vmem:[%s1 + $0x8] sm:$0xff]
  %v21 = vld [vmem:[%s1 + $0x10] sm:$0xff]
  %v22 = vld [vmem:[%s1 + $0x18] sm:$0xff]
  %v23 = vld [vmem:[%s1 + $0x20] sm:$0xff]
  %v24 = vld [vmem:[%s1 + $0x28] sm:$0xff]
  %v25 = vld [vmem:[%s1 + $0x30] sm:$0xff]
  %v26 = vld [vmem:[%s1 + $0x38] sm:$0xff]
  %vm27 = vcmask 523264
  %v29 = vsel %vm27, %v11, 0
  %v32 = vsel %vm27, %v12, 0
  %v35 = vsel %vm27, %v13, 0
  %v38 = vsel %vm27, %v14, 0
  %v41 = vsel %vm27, %v15, 0
  %v44 = vsel %vm27, %v16, 0
  %v47 = vsel %vm27, %v17, 0
  %v50 = vsel %vm27, %v18, 0
  %52 = vmatprep.subr.mxu0 0.0
  %53 = vmatpush1.msra.mxu0 %v19
  %54 = vmatprep.subr.mxu0 0.0
  %55 = vmatpush1.msra.mxu0 %v20
  %56 = vmatprep.subr.mxu0 0.0
  %57 = vmatpush1.msra.mxu0 %v21
  %58 = vmatprep.subr.mxu0 0.0
  %59 = vmatpush1.msra.mxu0 %v22
  %60 = vmatprep.subr.mxu0 0.0
  %61 = vmatpush1.msra.mxu0 %v23
  %62 = vmatprep.subr.mxu0 0.0
  %63 = vmatpush1.msra.mxu0 %v24
  %64 = vmatprep.subr.mxu0 0.0
  %65 = vmatpush1.msra.mxu0 %v25
  %66 = vmatprep.subr.mxu0 0.0
  %67 = vmatpush1.msra.mxu0 %v26
  %68 = vmatprep.subr.mxu0 0.0
  %69 = vmatpush1.msra.mxu0 0.0
  %70 = vmatprep.subr.mxu0 0.0
  %71 = vmatpush1.msra.mxu0 0.0
  %72 = vmatprep.subr.mxu0 0.0
  %73 = vmatpush1.msra.mxu0 0.0
  %74 = vmatprep.subr.mxu0 0.0
  %75 = vmatpush1.msra.mxu0 0.0
  %76 = vmatprep.subr.mxu0 0.0
  %77 = vmatpush1.msra.mxu0 0.0
  %78 = vmatprep.subr.mxu0 0.0
  %79 = vmatpush1.msra.mxu0 0.0
  %80 = vmatprep.subr.mxu0 0.0
  %81 = vmatpush1.msra.mxu0 0.0
  %82 = vmatprep.subr.mxu0 0.0
  %83 = vmatpush1.msra.mxu0 0.0
  %84 = vmatprep.subr.mxu0 0.0
  %85 = vmatpush1.msra.mxu0 0.0
  %86 = vmatprep.subr.mxu0 0.0
  %87 = vmatpush1.msra.mxu0 0.0
  %88 = vmatprep.subr.mxu0 0.0
  %89 = vmatpush1.msra.mxu0 0.0
  %90 = vmatprep.subr.mxu0 0.0
  %91 = vmatpush1.msra.mxu0 0.0
  %92 = vmatprep.subr.mxu0 0.0
  %93 = vmatpush1.msra.mxu0 0.0
  %94 = vmatprep.subr.mxu0 0.0
  %95 = vmatpush1.msra.mxu0 0.0
  %96 = vmatprep.subr.mxu0 0.0
  %97 = vmatpush1.msra.mxu0 0.0
  %98 = vmatprep.subr.mxu0 0.0
  %99 = vmatpush1.msra.mxu0 0.0
  %100 = vmatprep.subr.mxu0 0.0
  %101 = vmatpush1.msra.mxu0 0.0
  %102 = vmatprep.subr.mxu0 0.0
  %103 = vmatpush1.msra.mxu0 0.0
  %104 = vmatprep.subr.mxu0 0.0
  %105 = vmatpush1.msra.mxu0 0.0
  %106 = vmatprep.subr.mxu0 0.0
  %107 = vmatpush1.msra.mxu0 0.0
  %108 = vmatprep.subr.mxu0 0.0
  %109 = vmatpush1.msra.mxu0 0.0
  %110 = vmatprep.subr.mxu0 0.0
  %111 = vmatpush1.msra.mxu0 0.0
  %112 = vmatprep.subr.mxu0 0.0
  %113 = vmatpush1.msra.mxu0 0.0
  %114 = vmatprep.subr.mxu0 0.0
  %115 = vmatpush1.msra.mxu0 0.0
  %116 = vmatprep.mubr.f32.mxu0 0.0
  %117 = vmatmul.mubr.f32.gmra.mrb[0].mxu0 %v29
  %v118 = vpop.f32.mrb[0].mxu0
  %v119 = vadd.f32 0.0, %v118
  %v120 = vpop.f32.mrb[0].mxu0
  %121 = vmatprep.mubr.f32.mxu0 0.0
  %122 = vmatmul.mubr.f32.gmra.mrb[0].mxu0 %v32
  %v123 = vpop.f32.mrb[0].mxu0
  %v124 = vadd.f32 0.0, %v123
  %v125 = vpop.f32.mrb[0].mxu0
  %126 = vmatprep.mubr.f32.mxu0 0.0
  %127 = vmatmul.mubr.f32.gmra.mrb[0].mxu0 %v35
  %v128 = vpop.f32.mrb[0].mxu0
  %v129 = vadd.f32 0.0, %v128
  %v130 = vpop.f32.mrb[0].mxu0
  %131 = vmatprep.mubr.f32.mxu0 0.0
  %132 = vmatmul.mubr.f32.gmra.mrb[0].mxu0 %v38
  %v133 = vpop.f32.mrb[0].mxu0
  %v134 = vadd.f32 0.0, %v133
  %v135 = vpop.f32.mrb[0].mxu0
  %136 = vmatprep.mubr.f32.mxu0 0.0
  %137 = vmatmul.mubr.f32.gmra.mrb[0].mxu0 %v41
  %v138 = vpop.f32.mrb[0].mxu0
  %v139 = vadd.f32 0.0, %v138
  %v140 = vpop.f32.mrb[0].mxu0
  %141 = vmatprep.mubr.f32.mxu0 0.0
  %142 = vmatmul.mubr.f32.gmra.mrb[0].mxu0 %v44
  %v143 = vpop.f32.mrb[0].mxu0
  %v144 = vadd.f32 0.0, %v143
  %v145 = vpop.f32.mrb[0].mxu0
  %146 = vmatprep.mubr.f32.mxu0 0.0
  %147 = vmatmul.mubr.f32.gmra.mrb[0].mxu0 %v47
  %v148 = vpop.f32.mrb[0].mxu0
  %v149 = vadd.f32 0.0, %v148
  %v150 = vpop.f32.mrb[0].mxu0
  %151 = vmatprep.mubr.f32.mxu0 0.0
  %152 = vmatmul.mubr.f32.gmra.mrb[0].mxu0 %v50
  %v153 = vpop.f32.mrb[0].mxu0
  %v154 = vadd.f32 0.0, %v153
  %v155 = vpop.f32.mrb[0].mxu0
  %156 = vdwg.mxu0
  %vm157 = vcmask 261120
  %158 = vst.msk [vmem:[%s2] sm:$0xff] %vm157, %v119
  %159 = vst.msk [vmem:[%s2 + $0x8] sm:$0xff] %vm157, %v124
  %160 = vst.msk [vmem:[%s2 + $0x10] sm:$0xff] %vm157, %v129
  %161 = vst.msk [vmem:[%s2 + $0x18] sm:$0xff] %vm157, %v134
  %162 = vst.msk [vmem:[%s2 + $0x20] sm:$0xff] %vm157, %v139
  %163 = vst.msk [vmem:[%s2 + $0x28] sm:$0xff] %vm157, %v144
  %164 = vst.msk [vmem:[%s2 + $0x30] sm:$0xff] %vm157, %v149
  %165 = vst.msk [vmem:[%s2 + $0x38] sm:$0xff] %vm157, %v154
  // Predicated region
  $region10: #{tpu_custom_call.1} parent=0 // pred_check
    _
  $region11: #{tpu_custom_call.1} parent=0 // pred_check_branch
    %167 = sbr.rel (0) target = $region13
  $region12: #{tpu_custom_call.1} parent=0 // pred_region
    _
  $region13: #{tpu_custom_call.1} parent=0 // pred_fallthru
    _
  // Predicated region
  $region14: #{tpu_custom_call.1} parent=0 // pred_check
    _
  $region15: #{tpu_custom_call.1} parent=0 // pred_check_branch
    %169 = sbr.rel (0) target = $region17
  $region16: #{tpu_custom_call.1} parent=0 // pred_region
    _
  $region17: #{tpu_custom_call.1} parent=0 // pred_fallthru
    _

</llo_original>
